<compile_context>
chip_gen: v6e
topology: v6e:2x2x1
jax: 0.10.0
libtpu: 0.0.40
codegen_flags: <defaults>
</compile_context>

<pallas_src>
import jax
import jax.numpy as jnp
from jax.experimental import pallas as pl
from jax.experimental.pallas import tpu as pltpu


def _make_conv1x1_pad_kernel(BB, Cin, Cout, H, W, pad):
    Hp, Wp = H + 2 * pad, W + 2 * pad

    def kernel(x_ref, w_ref, b_ref, o_ref):
        # x_ref: (BB, Cin, H, W)     VMEM
        # w_ref: (Cout, Cin)         SMEM (scalar reads)
        # b_ref: (Cout,)             SMEM (scalar reads)
        # o_ref: (BB, Cout, Hp, Wp)  VMEM
        x = x_ref[...].astype(jnp.float32)        # load once; no-op cast for f32 input
        planes = []
        for co in range(Cout):                    # static unroll: Cout = 8
            b = b_ref[co]
            # Interior: bias + sum_ci w[co,ci] * x[:,ci]
            acc = jnp.full((BB, H, W), b, dtype=jnp.float32)
            for ci in range(Cin):                 # static unroll: Cin = 3
                acc = acc + w_ref[co, ci] * x[:, ci]
            # Zero padding of a 1x1 conv: border pixels equal the bias.
            row_b = jnp.full((BB, pad, W), b, dtype=jnp.float32)
            col_b = jnp.full((BB, Hp, pad), b, dtype=jnp.float32)
            plane = jnp.concatenate([row_b, acc, row_b], axis=1)    # (BB, Hp, W)
            plane = jnp.concatenate([col_b, plane, col_b], axis=2)  # (BB, Hp, Wp)
            planes.append(plane)
        out = jnp.stack(planes, axis=1)           # (BB, Cout, Hp, Wp)
        o_ref[...] = out.astype(o_ref.dtype)      # single aligned full-tile store

    return kernel


def conv1x1_padded(x_nchw, weight, bias, padding=1):
    """Conv2d(Cin, Cout, kernel=1, stride=1, padding=padding) in one fused kernel."""
    N, Cin, H, W = x_nchw.shape
    Cout = weight.shape[0]
    Hp, Wp = H + 2 * padding, W + 2 * padding

    # Fold batch into the block. Keep a 2-wide "parallel" grid when possible so
    # both TensorCores on v7x get work; on single-TC parts it is only 2 cheap steps.
    G = 2 if (N >= 2 and N % 2 == 0) else 1
    BB = N // G

    w_mat = weight.reshape(Cout, Cin).astype(jnp.float32)   # SMEM scalars
    b_vec = bias.reshape(Cout).astype(jnp.float32)          # SMEM scalars

    kernel = _make_conv1x1_pad_kernel(BB, Cin, Cout, H, W, padding)

    return pl.pallas_call(
        kernel,
        out_shape=jax.ShapeDtypeStruct((N, Cout, Hp, Wp), jnp.float32),
        grid=(G,),
        in_specs=[
            pl.BlockSpec((BB, Cin, H, W), lambda n: (n, 0, 0, 0)),
            pl.BlockSpec(memory_space=pltpu.MemorySpace.SMEM),
            pl.BlockSpec(memory_space=pltpu.MemorySpace.SMEM),
        ],
        out_specs=pl.BlockSpec((BB, Cout, Hp, Wp), lambda n: (n, 0, 0, 0)),
        compiler_params=pltpu.CompilerParams(
            dimension_semantics=("parallel",)),
    )(x_nchw, w_mat, b_vec)


def model_forward(x1, weight, bias):
    v1 = conv1x1_padded(x1, weight, bias, padding=1)
    # torch.split(v1, [1,4,2,3,1], dim=1) followed by torch.cat(dim=1) reconstructs
    # the channel axis -> identity on the conv output.
    # TODO(synk): the reference split sizes [1,4,2,3,1] sum to 11 != 8 output
    # channels, so the original PyTorch forward would raise; the split+cat
    # pattern itself is an identity and is implemented as such here.
    v3 = v1
    return v3


if __name__ == "__main__":
    key = jax.random.PRNGKey(0)
    kx, kw, kb = jax.random.split(key, 3)

    # Small shapes consistent with the module: Conv2d expects 3 input channels.
    N, Cin, H, W = 2, 3, 16, 16
    Cout = 8

    x1 = jax.random.normal(kx, (N, Cin, H, W), dtype=jnp.float32)
    weight = 0.1 * jax.random.normal(kw, (Cout, Cin, 1, 1), dtype=jnp.float32)
    bias = 0.1 * jax.random.normal(kb, (Cout,), dtype=jnp.float32)

    out = model_forward(x1, weight, bias)
    out = jax.block_until_ready(out)
    assert out.shape == (N, Cout, H + 2, W + 2), out.shape

    # Pure-JAX reference (exact f32 element-wise math, no MXU precision issues).
    xp = jnp.pad(x1, ((0, 0), (0, 0), (1, 1), (1, 1)))
    w = weight.reshape(Cout, Cin)
    ref = (jnp.sum(w[None, :, :, None, None] * xp[:, None, :, :, :], axis=2)
           + bias[None, :, None, None])
    assert jnp.allclose(out, ref, atol=1e-5, rtol=1e-5), float(
        jnp.max(jnp.abs(out - ref)))

    print("KERNEL_OK")
</pallas_src>

<mosaic_0001>
module attributes {stable_mosaic.version = 11 : i64} {
  func.func @kernel(%arg0: i32, %arg1: memref<1x3x16x16xf32, #tpu.memory_space<vmem>>, %arg2: memref<8x3xf32, #tpu.memory_space<smem>>, %arg3: memref<8xf32, #tpu.memory_space<smem>>, %arg4: memref<1x8x18x18xf32, #tpu.memory_space<vmem>>) attributes {dimension_semantics = [#tpu.dimension_semantics<parallel>], iteration_bounds = array<i64: 2>, scalar_prefetch = 0 : i64, scratch_operands = 0 : i64, tpu.core_type = #tpu.core_type<tc>, window_params = [{transform_indices = @transform_0, window_bounds = array<i64: 1, 3, 16, 16>}, {transform_indices = @transform_1, window_bounds = array<i64: 8, 3>}, {transform_indices = @transform_2, window_bounds = array<i64: 8>}, {transform_indices = @transform_3, window_bounds = array<i64: 1, 8, 18, 18>}]} {
    %c0 = arith.constant 0 : index
    %c0_0 = arith.constant 0 : index
    %c0_1 = arith.constant 0 : index
    %c0_2 = arith.constant 0 : index
    %0 = vector.load %arg1[%c0, %c0_0, %c0_1, %c0_2] : memref<1x3x16x16xf32, #tpu.memory_space<vmem>>, vector<1x3x16x16xf32>
    %c0_3 = arith.constant 0 : index
    %1 = memref.load %arg3[%c0_3] : memref<8xf32, #tpu.memory_space<smem>>
    %2 = vector.broadcast %1 : f32 to vector<1x16x16xf32>
    %c0_4 = arith.constant 0 : index
    %c0_5 = arith.constant 0 : index
    %3 = memref.load %arg2[%c0_4, %c0_5] : memref<8x3xf32, #tpu.memory_space<smem>>
    %4 = vector.extract_strided_slice %0 {offsets = [0, 0, 0, 0], sizes = [1, 1, 16, 16], strides = [1, 1, 1, 1]} : vector<1x3x16x16xf32> to vector<1x1x16x16xf32>
    %5 = vector.shape_cast %4 : vector<1x1x16x16xf32> to vector<1x16x16xf32>
    %6 = vector.broadcast %3 : f32 to vector<1x16x16xf32>
    %7 = arith.mulf %6, %5 : vector<1x16x16xf32>
    %8 = arith.addf %2, %7 : vector<1x16x16xf32>
    %c0_6 = arith.constant 0 : index
    %c1 = arith.constant 1 : index
    %9 = memref.load %arg2[%c0_6, %c1] : memref<8x3xf32, #tpu.memory_space<smem>>
    %10 = vector.extract_strided_slice %0 {offsets = [0, 1, 0, 0], sizes = [1, 1, 16, 16], strides = [1, 1, 1, 1]} : vector<1x3x16x16xf32> to vector<1x1x16x16xf32>
    %11 = vector.shape_cast %10 : vector<1x1x16x16xf32> to vector<1x16x16xf32>
    %12 = vector.broadcast %9 : f32 to vector<1x16x16xf32>
    %13 = arith.mulf %12, %11 : vector<1x16x16xf32>
    %14 = arith.addf %8, %13 : vector<1x16x16xf32>
    %c0_7 = arith.constant 0 : index
    %c2 = arith.constant 2 : index
    %15 = memref.load %arg2[%c0_7, %c2] : memref<8x3xf32, #tpu.memory_space<smem>>
    %16 = vector.extract_strided_slice %0 {offsets = [0, 2, 0, 0], sizes = [1, 1, 16, 16], strides = [1, 1, 1, 1]} : vector<1x3x16x16xf32> to vector<1x1x16x16xf32>
    %17 = vector.shape_cast %16 : vector<1x1x16x16xf32> to vector<1x16x16xf32>
    %18 = vector.broadcast %15 : f32 to vector<1x16x16xf32>
    %19 = arith.mulf %18, %17 : vector<1x16x16xf32>
    %20 = arith.addf %14, %19 : vector<1x16x16xf32>
    %21 = vector.broadcast %1 : f32 to vector<1x1x16xf32>
    %22 = vector.broadcast %1 : f32 to vector<1x18x1xf32>
    %23 = tpu.concatenate %21, %20, %21 in 1 : vector<1x1x16xf32>, vector<1x16x16xf32>, vector<1x1x16xf32> -> vector<1x18x16xf32>
    %24 = tpu.concatenate %22, %23, %22 in 2 : vector<1x18x1xf32>, vector<1x18x16xf32>, vector<1x18x1xf32> -> vector<1x18x18xf32>
    %c1_8 = arith.constant 1 : index
    %25 = memref.load %arg3[%c1_8] : memref<8xf32, #tpu.memory_space<smem>>
    %26 = vector.broadcast %25 : f32 to vector<1x16x16xf32>
    %c1_9 = arith.constant 1 : index
    %c0_10 = arith.constant 0 : index
    %27 = memref.load %arg2[%c1_9, %c0_10] : memref<8x3xf32, #tpu.memory_space<smem>>
    %28 = vector.extract_strided_slice %0 {offsets = [0, 0, 0, 0], sizes = [1, 1, 16, 16], strides = [1, 1, 1, 1]} : vector<1x3x16x16xf32> to vector<1x1x16x16xf32>
    %29 = vector.shape_cast %28 : vector<1x1x16x16xf32> to vector<1x16x16xf32>
    %30 = vector.broadcast %27 : f32 to vector<1x16x16xf32>
    %31 = arith.mulf %30, %29 : vector<1x16x16xf32>
    %32 = arith.addf %26, %31 : vector<1x16x16xf32>
    %c1_11 = arith.constant 1 : index
    %c1_12 = arith.constant 1 : index
    %33 = memref.load %arg2[%c1_11, %c1_12] : memref<8x3xf32, #tpu.memory_space<smem>>
    %34 = vector.extract_strided_slice %0 {offsets = [0, 1, 0, 0], sizes = [1, 1, 16, 16], strides = [1, 1, 1, 1]} : vector<1x3x16x16xf32> to vector<1x1x16x16xf32>
    %35 = vector.shape_cast %34 : vector<1x1x16x16xf32> to vector<1x16x16xf32>
    %36 = vector.broadcast %33 : f32 to vector<1x16x16xf32>
    %37 = arith.mulf %36, %35 : vector<1x16x16xf32>
    %38 = arith.addf %32, %37 : vector<1x16x16xf32>
    %c1_13 = arith.constant 1 : index
    %c2_14 = arith.constant 2 : index
    %39 = memref.load %arg2[%c1_13, %c2_14] : memref<8x3xf32, #tpu.memory_space<smem>>
    %40 = vector.extract_strided_slice %0 {offsets = [0, 2, 0, 0], sizes = [1, 1, 16, 16], strides = [1, 1, 1, 1]} : vector<1x3x16x16xf32> to vector<1x1x16x16xf32>
    %41 = vector.shape_cast %40 : vector<1x1x16x16xf32> to vector<1x16x16xf32>
    %42 = vector.broadcast %39 : f32 to vector<1x16x16xf32>
    %43 = arith.mulf %42, %41 : vector<1x16x16xf32>
    %44 = arith.addf %38, %43 : vector<1x16x16xf32>
    %45 = vector.broadcast %25 : f32 to vector<1x1x16xf32>
    %46 = vector.broadcast %25 : f32 to vector<1x18x1xf32>
    %47 = tpu.concatenate %45, %44, %45 in 1 : vector<1x1x16xf32>, vector<1x16x16xf32>, vector<1x1x16xf32> -> vector<1x18x16xf32>
    %48 = tpu.concatenate %46, %47, %46 in 2 : vector<1x18x1xf32>, vector<1x18x16xf32>, vector<1x18x1xf32> -> vector<1x18x18xf32>
    %c2_15 = arith.constant 2 : index
    %49 = memref.load %arg3[%c2_15] : memref<8xf32, #tpu.memory_space<smem>>
    %50 = vector.broadcast %49 : f32 to vector<1x16x16xf32>
    %c2_16 = arith.constant 2 : index
    %c0_17 = arith.constant 0 : index
    %51 = memref.load %arg2[%c2_16, %c0_17] : memref<8x3xf32, #tpu.memory_space<smem>>
    %52 = vector.extract_strided_slice %0 {offsets = [0, 0, 0, 0], sizes = [1, 1, 16, 16], strides = [1, 1, 1, 1]} : vector<1x3x16x16xf32> to vector<1x1x16x16xf32>
    %53 = vector.shape_cast %52 : vector<1x1x16x16xf32> to vector<1x16x16xf32>
    %54 = vector.broadcast %51 : f32 to vector<1x16x16xf32>
    %55 = arith.mulf %54, %53 : vector<1x16x16xf32>
    %56 = arith.addf %50, %55 : vector<1x16x16xf32>
    %c2_18 = arith.constant 2 : index
    %c1_19 = arith.constant 1 : index
    %57 = memref.load %arg2[%c2_18, %c1_19] : memref<8x3xf32, #tpu.memory_space<smem>>
    %58 = vector.extract_strided_slice %0 {offsets = [0, 1, 0, 0], sizes = [1, 1, 16, 16], strides = [1, 1, 1, 1]} : vector<1x3x16x16xf32> to vector<1x1x16x16xf32>
    %59 = vector.shape_cast %58 : vector<1x1x16x16xf32> to vector<1x16x16xf32>
    %60 = vector.broadcast %57 : f32 to vector<1x16x16xf32>
    %61 = arith.mulf %60, %59 : vector<1x16x16xf32>
    %62 = arith.addf %56, %61 : vector<1x16x16xf32>
    %c2_20 = arith.constant 2 : index
    %c2_21 = arith.constant 2 : index
    %63 = memref.load %arg2[%c2_20, %c2_21] : memref<8x3xf32, #tpu.memory_space<smem>>
    %64 = vector.extract_strided_slice %0 {offsets = [0, 2, 0, 0], sizes = [1, 1, 16, 16], strides = [1, 1, 1, 1]} : vector<1x3x16x16xf32> to vector<1x1x16x16xf32>
    %65 = vector.shape_cast %64 : vector<1x1x16x16xf32> to vector<1x16x16xf32>
    %66 = vector.broadcast %63 : f32 to vector<1x16x16xf32>
    %67 = arith.mulf %66, %65 : vector<1x16x16xf32>
    %68 = arith.addf %62, %67 : vector<1x16x16xf32>
    %69 = vector.broadcast %49 : f32 to vector<1x1x16xf32>
    %70 = vector.broadcast %49 : f32 to vector<1x18x1xf32>
    %71 = tpu.concatenate %69, %68, %69 in 1 : vector<1x1x16xf32>, vector<1x16x16xf32>, vector<1x1x16xf32> -> vector<1x18x16xf32>
    %72 = tpu.concatenate %70, %71, %70 in 2 : vector<1x18x1xf32>, vector<1x18x16xf32>, vector<1x18x1xf32> -> vector<1x18x18xf32>
    %c3 = arith.constant 3 : index
    %73 = memref.load %arg3[%c3] : memref<8xf32, #tpu.memory_space<smem>>
    %74 = vector.broadcast %73 : f32 to vector<1x16x16xf32>
    %c3_22 = arith.constant 3 : index
    %c0_23 = arith.constant 0 : index
    %75 = memref.load %arg2[%c3_22, %c0_23] : memref<8x3xf32, #tpu.memory_space<smem>>
    %76 = vector.extract_strided_slice %0 {offsets = [0, 0, 0, 0], sizes = [1, 1, 16, 16], strides = [1, 1, 1, 1]} : vector<1x3x16x16xf32> to vector<1x1x16x16xf32>
    %77 = vector.shape_cast %76 : vector<1x1x16x16xf32> to vector<1x16x16xf32>
    %78 = vector.broadcast %75 : f32 to vector<1x16x16xf32>
    %79 = arith.mulf %78, %77 : vector<1x16x16xf32>
    %80 = arith.addf %74, %79 : vector<1x16x16xf32>
    %c3_24 = arith.constant 3 : index
    %c1_25 = arith.constant 1 : index
    %81 = memref.load %arg2[%c3_24, %c1_25] : memref<8x3xf32, #tpu.memory_space<smem>>
    %82 = vector.extract_strided_slice %0 {offsets = [0, 1, 0, 0], sizes = [1, 1, 16, 16], strides = [1, 1, 1, 1]} : vector<1x3x16x16xf32> to vector<1x1x16x16xf32>
    %83 = vector.shape_cast %82 : vector<1x1x16x16xf32> to vector<1x16x16xf32>
    %84 = vector.broadcast %81 : f32 to vector<1x16x16xf32>
    %85 = arith.mulf %84, %83 : vector<1x16x16xf32>
    %86 = arith.addf %80, %85 : vector<1x16x16xf32>
    %c3_26 = arith.constant 3 : index
    %c2_27 = arith.constant 2 : index
    %87 = memref.load %arg2[%c3_26, %c2_27] : memref<8x3xf32, #tpu.memory_space<smem>>
    %88 = vector.extract_strided_slice %0 {offsets = [0, 2, 0, 0], sizes = [1, 1, 16, 16], strides = [1, 1, 1, 1]} : vector<1x3x16x16xf32> to vector<1x1x16x16xf32>
    %89 = vector.shape_cast %88 : vector<1x1x16x16xf32> to vector<1x16x16xf32>
    %90 = vector.broadcast %87 : f32 to vector<1x16x16xf32>
    %91 = arith.mulf %90, %89 : vector<1x16x16xf32>
    %92 = arith.addf %86, %91 : vector<1x16x16xf32>
    %93 = vector.broadcast %73 : f32 to vector<1x1x16xf32>
    %94 = vector.broadcast %73 : f32 to vector<1x18x1xf32>
    %95 = tpu.concatenate %93, %92, %93 in 1 : vector<1x1x16xf32>, vector<1x16x16xf32>, vector<1x1x16xf32> -> vector<1x18x16xf32>
    %96 = tpu.concatenate %94, %95, %94 in 2 : vector<1x18x1xf32>, vector<1x18x16xf32>, vector<1x18x1xf32> -> vector<1x18x18xf32>
    %c4 = arith.constant 4 : index
    %97 = memref.load %arg3[%c4] : memref<8xf32, #tpu.memory_space<smem>>
    %98 = vector.broadcast %97 : f32 to vector<1x16x16xf32>
    %c4_28 = arith.constant 4 : index
    %c0_29 = arith.constant 0 : index
    %99 = memref.load %arg2[%c4_28, %c0_29] : memref<8x3xf32, #tpu.memory_space<smem>>
    %100 = vector.extract_strided_slice %0 {offsets = [0, 0, 0, 0], sizes = [1, 1, 16, 16], strides = [1, 1, 1, 1]} : vector<1x3x16x16xf32> to vector<1x1x16x16xf32>
    %101 = vector.shape_cast %100 : vector<1x1x16x16xf32> to vector<1x16x16xf32>
    %102 = vector.broadcast %99 : f32 to vector<1x16x16xf32>
    %103 = arith.mulf %102, %101 : vector<1x16x16xf32>
    %104 = arith.addf %98, %103 : vector<1x16x16xf32>
    %c4_30 = arith.constant 4 : index
    %c1_31 = arith.constant 1 : index
    %105 = memref.load %arg2[%c4_30, %c1_31] : memref<8x3xf32, #tpu.memory_space<smem>>
    %106 = vector.extract_strided_slice %0 {offsets = [0, 1, 0, 0], sizes = [1, 1, 16, 16], strides = [1, 1, 1, 1]} : vector<1x3x16x16xf32> to vector<1x1x16x16xf32>
    %107 = vector.shape_cast %106 : vector<1x1x16x16xf32> to vector<1x16x16xf32>
    %108 = vector.broadcast %105 : f32 to vector<1x16x16xf32>
    %109 = arith.mulf %108, %107 : vector<1x16x16xf32>
    %110 = arith.addf %104, %109 : vector<1x16x16xf32>
    %c4_32 = arith.constant 4 : index
    %c2_33 = arith.constant 2 : index
    %111 = memref.load %arg2[%c4_32, %c2_33] : memref<8x3xf32, #tpu.memory_space<smem>>
    %112 = vector.extract_strided_slice %0 {offsets = [0, 2, 0, 0], sizes = [1, 1, 16, 16], strides = [1, 1, 1, 1]} : vector<1x3x16x16xf32> to vector<1x1x16x16xf32>
    %113 = vector.shape_cast %112 : vector<1x1x16x16xf32> to vector<1x16x16xf32>
    %114 = vector.broadcast %111 : f32 to vector<1x16x16xf32>
    %115 = arith.mulf %114, %113 : vector<1x16x16xf32>
    %116 = arith.addf %110, %115 : vector<1x16x16xf32>
    %117 = vector.broadcast %97 : f32 to vector<1x1x16xf32>
    %118 = vector.broadcast %97 : f32 to vector<1x18x1xf32>
    %119 = tpu.concatenate %117, %116, %117 in 1 : vector<1x1x16xf32>, vector<1x16x16xf32>, vector<1x1x16xf32> -> vector<1x18x16xf32>
    %120 = tpu.concatenate %118, %119, %118 in 2 : vector<1x18x1xf32>, vector<1x18x16xf32>, vector<1x18x1xf32> -> vector<1x18x18xf32>
    %c5 = arith.constant 5 : index
    %121 = memref.load %arg3[%c5] : memref<8xf32, #tpu.memory_space<smem>>
    %122 = vector.broadcast %121 : f32 to vector<1x16x16xf32>
    %c5_34 = arith.constant 5 : index
    %c0_35 = arith.constant 0 : index
    %123 = memref.load %arg2[%c5_34, %c0_35] : memref<8x3xf32, #tpu.memory_space<smem>>
    %124 = vector.extract_strided_slice %0 {offsets = [0, 0, 0, 0], sizes = [1, 1, 16, 16], strides = [1, 1, 1, 1]} : vector<1x3x16x16xf32> to vector<1x1x16x16xf32>
    %125 = vector.shape_cast %124 : vector<1x1x16x16xf32> to vector<1x16x16xf32>
    %126 = vector.broadcast %123 : f32 to vector<1x16x16xf32>
    %127 = arith.mulf %126, %125 : vector<1x16x16xf32>
    %128 = arith.addf %122, %127 : vector<1x16x16xf32>
    %c5_36 = arith.constant 5 : index
    %c1_37 = arith.constant 1 : index
    %129 = memref.load %arg2[%c5_36, %c1_37] : memref<8x3xf32, #tpu.memory_space<smem>>
    %130 = vector.extract_strided_slice %0 {offsets = [0, 1, 0, 0], sizes = [1, 1, 16, 16], strides = [1, 1, 1, 1]} : vector<1x3x16x16xf32> to vector<1x1x16x16xf32>
    %131 = vector.shape_cast %130 : vector<1x1x16x16xf32> to vector<1x16x16xf32>
    %132 = vector.broadcast %129 : f32 to vector<1x16x16xf32>
    %133 = arith.mulf %132, %131 : vector<1x16x16xf32>
    %134 = arith.addf %128, %133 : vector<1x16x16xf32>
    %c5_38 = arith.constant 5 : index
    %c2_39 = arith.constant 2 : index
    %135 = memref.load %arg2[%c5_38, %c2_39] : memref<8x3xf32, #tpu.memory_space<smem>>
    %136 = vector.extract_strided_slice %0 {offsets = [0, 2, 0, 0], sizes = [1, 1, 16, 16], strides = [1, 1, 1, 1]} : vector<1x3x16x16xf32> to vector<1x1x16x16xf32>
    %137 = vector.shape_cast %136 : vector<1x1x16x16xf32> to vector<1x16x16xf32>
    %138 = vector.broadcast %135 : f32 to vector<1x16x16xf32>
    %139 = arith.mulf %138, %137 : vector<1x16x16xf32>
    %140 = arith.addf %134, %139 : vector<1x16x16xf32>
    %141 = vector.broadcast %121 : f32 to vector<1x1x16xf32>
    %142 = vector.broadcast %121 : f32 to vector<1x18x1xf32>
    %143 = tpu.concatenate %141, %140, %141 in 1 : vector<1x1x16xf32>, vector<1x16x16xf32>, vector<1x1x16xf32> -> vector<1x18x16xf32>
    %144 = tpu.concatenate %142, %143, %142 in 2 : vector<1x18x1xf32>, vector<1x18x16xf32>, vector<1x18x1xf32> -> vector<1x18x18xf32>
    %c6 = arith.constant 6 : index
    %145 = memref.load %arg3[%c6] : memref<8xf32, #tpu.memory_space<smem>>
    %146 = vector.broadcast %145 : f32 to vector<1x16x16xf32>
    %c6_40 = arith.constant 6 : index
    %c0_41 = arith.constant 0 : index
    %147 = memref.load %arg2[%c6_40, %c0_41] : memref<8x3xf32, #tpu.memory_space<smem>>
    %148 = vector.extract_strided_slice %0 {offsets = [0, 0, 0, 0], sizes = [1, 1, 16, 16], strides = [1, 1, 1, 1]} : vector<1x3x16x16xf32> to vector<1x1x16x16xf32>
    %149 = vector.shape_cast %148 : vector<1x1x16x16xf32> to vector<1x16x16xf32>
    %150 = vector.broadcast %147 : f32 to vector<1x16x16xf32>
    %151 = arith.mulf %150, %149 : vector<1x16x16xf32>
    %152 = arith.addf %146, %151 : vector<1x16x16xf32>
    %c6_42 = arith.constant 6 : index
    %c1_43 = arith.constant 1 : index
    %153 = memref.load %arg2[%c6_42, %c1_43] : memref<8x3xf32, #tpu.memory_space<smem>>
    %154 = vector.extract_strided_slice %0 {offsets = [0, 1, 0, 0], sizes = [1, 1, 16, 16], strides = [1, 1, 1, 1]} : vector<1x3x16x16xf32> to vector<1x1x16x16xf32>
    %155 = vector.shape_cast %154 : vector<1x1x16x16xf32> to vector<1x16x16xf32>
    %156 = vector.broadcast %153 : f32 to vector<1x16x16xf32>
    %157 = arith.mulf %156, %155 : vector<1x16x16xf32>
    %158 = arith.addf %152, %157 : vector<1x16x16xf32>
    %c6_44 = arith.constant 6 : index
    %c2_45 = arith.constant 2 : index
    %159 = memref.load %arg2[%c6_44, %c2_45] : memref<8x3xf32, #tpu.memory_space<smem>>
    %160 = vector.extract_strided_slice %0 {offsets = [0, 2, 0, 0], sizes = [1, 1, 16, 16], strides = [1, 1, 1, 1]} : vector<1x3x16x16xf32> to vector<1x1x16x16xf32>
    %161 = vector.shape_cast %160 : vector<1x1x16x16xf32> to vector<1x16x16xf32>
    %162 = vector.broadcast %159 : f32 to vector<1x16x16xf32>
    %163 = arith.mulf %162, %161 : vector<1x16x16xf32>
    %164 = arith.addf %158, %163 : vector<1x16x16xf32>
    %165 = vector.broadcast %145 : f32 to vector<1x1x16xf32>
    %166 = vector.broadcast %145 : f32 to vector<1x18x1xf32>
    %167 = tpu.concatenate %165, %164, %165 in 1 : vector<1x1x16xf32>, vector<1x16x16xf32>, vector<1x1x16xf32> -> vector<1x18x16xf32>
    %168 = tpu.concatenate %166, %167, %166 in 2 : vector<1x18x1xf32>, vector<1x18x16xf32>, vector<1x18x1xf32> -> vector<1x18x18xf32>
    %c7 = arith.constant 7 : index
    %169 = memref.load %arg3[%c7] : memref<8xf32, #tpu.memory_space<smem>>
    %170 = vector.broadcast %169 : f32 to vector<1x16x16xf32>
    %c7_46 = arith.constant 7 : index
    %c0_47 = arith.constant 0 : index
    %171 = memref.load %arg2[%c7_46, %c0_47] : memref<8x3xf32, #tpu.memory_space<smem>>
    %172 = vector.extract_strided_slice %0 {offsets = [0, 0, 0, 0], sizes = [1, 1, 16, 16], strides = [1, 1, 1, 1]} : vector<1x3x16x16xf32> to vector<1x1x16x16xf32>
    %173 = vector.shape_cast %172 : vector<1x1x16x16xf32> to vector<1x16x16xf32>
    %174 = vector.broadcast %171 : f32 to vector<1x16x16xf32>
    %175 = arith.mulf %174, %173 : vector<1x16x16xf32>
    %176 = arith.addf %170, %175 : vector<1x16x16xf32>
    %c7_48 = arith.constant 7 : index
    %c1_49 = arith.constant 1 : index
    %177 = memref.load %arg2[%c7_48, %c1_49] : memref<8x3xf32, #tpu.memory_space<smem>>
    %178 = vector.extract_strided_slice %0 {offsets = [0, 1, 0, 0], sizes = [1, 1, 16, 16], strides = [1, 1, 1, 1]} : vector<1x3x16x16xf32> to vector<1x1x16x16xf32>
    %179 = vector.shape_cast %178 : vector<1x1x16x16xf32> to vector<1x16x16xf32>
    %180 = vector.broadcast %177 : f32 to vector<1x16x16xf32>
    %181 = arith.mulf %180, %179 : vector<1x16x16xf32>
    %182 = arith.addf %176, %181 : vector<1x16x16xf32>
    %c7_50 = arith.constant 7 : index
    %c2_51 = arith.constant 2 : index
    %183 = memref.load %arg2[%c7_50, %c2_51] : memref<8x3xf32, #tpu.memory_space<smem>>
    %184 = vector.extract_strided_slice %0 {offsets = [0, 2, 0, 0], sizes = [1, 1, 16, 16], strides = [1, 1, 1, 1]} : vector<1x3x16x16xf32> to vector<1x1x16x16xf32>
    %185 = vector.shape_cast %184 : vector<1x1x16x16xf32> to vector<1x16x16xf32>
    %186 = vector.broadcast %183 : f32 to vector<1x16x16xf32>
    %187 = arith.mulf %186, %185 : vector<1x16x16xf32>
    %188 = arith.addf %182, %187 : vector<1x16x16xf32>
    %189 = vector.broadcast %169 : f32 to vector<1x1x16xf32>
    %190 = vector.broadcast %169 : f32 to vector<1x18x1xf32>
    %191 = tpu.concatenate %189, %188, %189 in 1 : vector<1x1x16xf32>, vector<1x16x16xf32>, vector<1x1x16xf32> -> vector<1x18x16xf32>
    %192 = tpu.concatenate %190, %191, %190 in 2 : vector<1x18x1xf32>, vector<1x18x16xf32>, vector<1x18x1xf32> -> vector<1x18x18xf32>
    %193 = vector.shape_cast %24 : vector<1x18x18xf32> to vector<1x1x18x18xf32>
    %194 = vector.shape_cast %48 : vector<1x18x18xf32> to vector<1x1x18x18xf32>
    %195 = vector.shape_cast %72 : vector<1x18x18xf32> to vector<1x1x18x18xf32>
    %196 = vector.shape_cast %96 : vector<1x18x18xf32> to vector<1x1x18x18xf32>
    %197 = vector.shape_cast %120 : vector<1x18x18xf32> to vector<1x1x18x18xf32>
    %198 = vector.shape_cast %144 : vector<1x18x18xf32> to vector<1x1x18x18xf32>
    %199 = vector.shape_cast %168 : vector<1x18x18xf32> to vector<1x1x18x18xf32>
    %200 = vector.shape_cast %192 : vector<1x18x18xf32> to vector<1x1x18x18xf32>
    %201 = tpu.concatenate %193, %194, %195, %196, %197, %198, %199, %200 in 1 : vector<1x1x18x18xf32>, vector<1x1x18x18xf32>, vector<1x1x18x18xf32>, vector<1x1x18x18xf32>, vector<1x1x18x18xf32>, vector<1x1x18x18xf32>, vector<1x1x18x18xf32>, vector<1x1x18x18xf32> -> vector<1x8x18x18xf32>
    %c0_52 = arith.constant 0 : index
    %c0_53 = arith.constant 0 : index
    %c0_54 = arith.constant 0 : index
    %c0_55 = arith.constant 0 : index
    %202 = vector.load %arg4[%c0_52, %c0_53, %c0_54, %c0_55] : memref<1x8x18x18xf32, #tpu.memory_space<vmem>>, vector<1x8x18x18xf32>
    tpu.vector_store %arg4[%c0_52, %c0_53, %c0_54, %c0_55], %201 {strides = array<i32>} : memref<1x8x18x18xf32, #tpu.memory_space<vmem>>, vector<1x8x18x18xf32>,
    return
  }
  func.func @transform_0(%arg0: i32) -> (i32, i32, i32, i32) {
    %c0_i32 = arith.constant 0 : i32
    %c0_i32_0 = arith.constant 0 : i32
    %c0_i32_1 = arith.constant 0 : i32
    %c0_i32_2 = arith.constant 0 : i32
    return %arg0, %c0_i32, %c0_i32_0, %c0_i32_1 : i32, i32, i32, i32
  }
  func.func @transform_1(%arg0: i32) -> (i32, i32) {
    %c0_i32 = arith.constant 0 : i32
    %c0_i32_0 = arith.constant 0 : i32
    %c0_i32_1 = arith.constant 0 : i32
    return %c0_i32, %c0_i32_0 : i32, i32
  }
  func.func @transform_2(%arg0: i32) -> i32 {
    %c0_i32 = arith.constant 0 : i32
    %c0_i32_0 = arith.constant 0 : i32
    return %c0_i32 : i32
  }
  func.func @transform_3(%arg0: i32) -> (i32, i32, i32, i32) {
    %c0_i32 = arith.constant 0 : i32
    %c0_i32_0 = arith.constant 0 : i32
    %c0_i32_1 = arith.constant 0 : i32
    %c0_i32_2 = arith.constant 0 : i32
    return %arg0, %c0_i32, %c0_i32_0, %c0_i32_1 : i32, i32, i32, i32
  }
}

</mosaic_0001>

<llo_original>
// kernel: tpu_custom_call.1
$region0: #{tpu_custom_call.1}
  #allocation0 [shape = 'u32[]', space=smem, size = 0x4, offset = 0x4, fixed_abs, tag = 'smem constant byte address 0x4 - core index']
  #allocation1 [shape = 'u32[144,128]{1,0:T(1,128)}', space=vmem, size = 0x12000, scoped, tag = 'internal scratch']
  %s0 = inlined_call_operand.hbm [shape: f32[2,3,16,16], index: 0, kind: input, shape index: {}]
  %s1 = inlined_call_operand.vmem [shape: f32[8,3], index: 1, kind: input, shape index: {}]
  %s2 = inlined_call_operand.vmem [shape: f32[8], index: 2, kind: input, shape index: {}]
  %s3 = inlined_call_operand.vmem [shape: f32[2,8,18,18], index: 3, kind: output, shape index: {}]
  %s4 = sld [smem:[#allocation0]]
  $region57: #{tpu_custom_call.1} parent=0
    _
  %s6 = ssub.s32 1, %s4
  %s7 = scalar_select 0, %s6, %s4
  $region1: #{tpu_custom_call.1} parent=0
    #allocation2 [shape = 'u8[49152]{0}', space=vmem, size = 0xc000, scoped, tag = 'input window, operand 0']
    #allocation3 [shape = 's32[2]{0}', space=sflag, size = 0x8, scoped, tag = 'scoped memory for tpu_custom_call.1']
    #allocation4 [shape = 's32[2]{0}', space=sflag, size = 0x8, scoped, tag = 'scoped memory for tpu_custom_call.1']
    #allocation5 [shape = 'u8[4096]{0}', space=smem, size = 0x1000, scoped, tag = 'input window, operand 1, single buffered']
    #allocation6 [shape = 'u8[512]{0}', space=smem, size = 0x200, scoped, tag = 'input window, operand 2, single buffered']
    #allocation7 [shape = 's32[1]{0}', space=sflag, size = 0x4, scoped, tag = 'scoped memory for tpu_custom_call.1']
    %8 = vsyncpa [#allocation3], 0
    %s9 = scalar_lea.sflag [#allocation3], 1
    %10 = vsyncpa %s9, 0
    %11 = vsyncpa [#allocation4], 0
    %12 = vsyncpa [#allocation7], 0
    loop: start=0, step=1, limit=4
    $region2: #{tpu_custom_call.1} parent=1 // loop_pre_header
      _
    $region3: #{tpu_custom_call.1} parent=1 // loop_header
      %s14 = sphi 0, %s18
      %p15 = scmp.ge.s32.totalorder %s14, 4
      %s24 = sphi 0, %s26
      %s27 = sphi 0, %s24
      %s28 = sphi 0, %s27
      %s44 = sphi 0, %s28
      %s48 = sphi 0, %s48
      %s50 = sphi 0, %s48
      %s51 = sphi 0, %s50
      %s65 = sphi 0, %s51
      %s69 = sphi 0, %s69
      %s71 = sphi 0, %s69
      %s72 = sphi 0, %s71
      %s86 = sphi 0, %s72
      %s92 = sphi 0, %s94
      %s95 = sphi 0, %s92
      %s96 = sphi 0, %s95
      %s112 = sphi 0, %s96
    $region4: #{tpu_custom_call.1} parent=1 // loop_header_branch
      %17 = sbr.rel (%p15) target = $region8
    $region5: #{tpu_custom_call.1} parent=1 // loop_body
      %s19 = ssub.s32 %s14, 1
      %s20 = ssub.s32 %s14, 2
      %s21 = sadd.s32 %s14, 1
      %s22 = ssub.s32 %s14, %s21
      %p23 = scmp.eq.s32.totalorder %s22, 0
      %s25 = sadd.s32 %s24, 1
      %s26 = scalar_select %p23, %s24, %s25
      %p29 = pneg %p23
      %p30 = scmp.eq.s32.totalorder %s14, 1
      %p31 = por %p29, %p30
      %p32 = scmp.ne.s32.totalorder %s24, %s27
      %p33 = scmp.eq.s32.totalorder %s14, 0
      %p34 = por %p32, %p33
      %p35 = scmp.ne.s32.totalorder %s24, %s27
      %p36 = scmp.eq.s32.totalorder %s19, 1
      %p37 = por %p35, %p36
      %p38 = scmp.ne.s32.totalorder %s27, %s28
      %p39 = scmp.eq.s32.totalorder %s19, 0
      %p40 = por %p38, %p39
      %p41 = scmp.ne.s32.totalorder %s27, %s28
      %p42 = scmp.eq.s32.totalorder %s20, 1
      %p43 = por %p41, %p42
      %p45 = scmp.ne.s32.totalorder %s28, %s44
      %p46 = scmp.eq.s32.totalorder %s20, 0
      %p47 = por %p45, %p46
      %s49 = sadd.s32 %s48, 1
      %p52 = scmp.eq.s32.totalorder %s14, 1
      %p53 = scmp.ne.s32.totalorder %s48, %s50
      %p54 = scmp.eq.s32.totalorder %s14, 0
      %p55 = por %p53, %p54
      %p56 = scmp.ne.s32.totalorder %s48, %s50
      %p57 = scmp.eq.s32.totalorder %s19, 1
      %p58 = por %p56, %p57
      %p59 = scmp.ne.s32.totalorder %s50, %s51
      %p60 = scmp.eq.s32.totalorder %s19, 0
      %p61 = por %p59, %p60
      %p62 = scmp.ne.s32.totalorder %s50, %s51
      %p63 = scmp.eq.s32.totalorder %s20, 1
      %p64 = por %p62, %p63
      %p66 = scmp.ne.s32.totalorder %s51, %s65
      %p67 = scmp.eq.s32.totalorder %s20, 0
      %p68 = por %p66, %p67
      %s70 = sadd.s32 %s69, 1
      %p73 = scmp.eq.s32.totalorder %s14, 1
      %p74 = scmp.ne.s32.totalorder %s69, %s71
      %p75 = scmp.eq.s32.totalorder %s14, 0
      %p76 = por %p74, %p75
      %p77 = scmp.ne.s32.totalorder %s69, %s71
      %p78 = scmp.eq.s32.totalorder %s19, 1
      %p79 = por %p77, %p78
      %p80 = scmp.ne.s32.totalorder %s71, %s72
      %p81 = scmp.eq.s32.totalorder %s19, 0
      %p82 = por %p80, %p81
      %p83 = scmp.ne.s32.totalorder %s71, %s72
      %p84 = scmp.eq.s32.totalorder %s20, 1
      %p85 = por %p83, %p84
      %p87 = scmp.ne.s32.totalorder %s72, %s86
      %p88 = scmp.eq.s32.totalorder %s20, 0
      %p89 = por %p87, %p88
      %s90 = ssub.s32 %s14, %s21
      %p91 = scmp.eq.s32.totalorder %s90, 0
      %s93 = sadd.s32 %s92, 1
      %s94 = scalar_select %p91, %s92, %s93
      %p97 = pneg %p91
      %p98 = scmp.eq.s32.totalorder %s14, 1
      %p99 = por %p97, %p98
      %p100 = scmp.ne.s32.totalorder %s92, %s95
      %p101 = scmp.eq.s32.totalorder %s14, 0
      %p102 = por %p100, %p101
      %p103 = scmp.ne.s32.totalorder %s92, %s95
      %p104 = scmp.eq.s32.totalorder %s19, 1
      %p105 = por %p103, %p104
      %p106 = scmp.ne.s32.totalorder %s95, %s96
      %p107 = scmp.eq.s32.totalorder %s19, 0
      %p108 = por %p106, %p107
      %p109 = scmp.ne.s32.totalorder %s95, %s96
      %p110 = scmp.eq.s32.totalorder %s20, 1
      %p111 = por %p109, %p110
      %p113 = scmp.ne.s32.totalorder %s96, %s112
      %p114 = scmp.eq.s32.totalorder %s20, 0
      %p115 = por %p113, %p114
      %p116 = scmp.le.s32.totalorder 1, %s14
      %p117 = scmp.lt.s32.totalorder %s14, 3
      %p118 = pnand %p116, %p117
      %p119 = pneg %p118
      // Predicated region
      $region9: #{tpu_custom_call.1} parent=5 // pred_check
        _
      $region10: #{tpu_custom_call.1} parent=5 // pred_check_branch
        %121 = sbr.rel (%p118) target = $region12
      $region11: #{tpu_custom_call.1} parent=5 // pred_region
        %s122 = ssub.s32 %s14, 1
        // Predicated region
        $region13: #{tpu_custom_call.1} parent=11 // pred_check
          %p123 = pneg %p61
        $region14: #{tpu_custom_call.1} parent=11 // pred_check_branch
          %125 = sbr.rel (%p123) target = $region16
        $region15: #{tpu_custom_call.1} parent=11 // pred_region
          %s127 = ssub.s32 128, 128
          %128 = vsyncadd [#allocation4], %s127
          %s130 = sshll.u32 %s1, 4
          %s131 = int_to_ptr.vmem [resolvable:$true] %s130
          %133 = dma.vmem_to_smem %s131, 128, [#allocation5], [#allocation4]
        $region16: #{tpu_custom_call.1} parent=11 // pred_fallthru
          _
        // Predicated region
        $region17: #{tpu_custom_call.1} parent=11 // pred_check
          %p134 = pneg %p82
        $region18: #{tpu_custom_call.1} parent=11 // pred_check_branch
          %136 = sbr.rel (%p134) target = $region20
        $region19: #{tpu_custom_call.1} parent=11 // pred_region
          %s138 = ssub.s32 16, 16
          %139 = vsyncadd [#allocation7], %s138
          %s141 = sshll.u32 %s2, 4
          %s142 = int_to_ptr.vmem [resolvable:$true] %s141
          %144 = dma.vmem_to_smem %s142, 16, [#allocation6], [#allocation7]
        $region20: #{tpu_custom_call.1} parent=11 // pred_fallthru
          _
      $region12: #{tpu_custom_call.1} parent=5 // pred_fallthru
        _
      %p145 = scmp.lt.s32.totalorder %s14, 2
      // Predicated region
      $region21: #{tpu_custom_call.1} parent=5 // pred_check
        %p146 = pneg %p145
      $region22: #{tpu_custom_call.1} parent=5 // pred_check_branch
        %148 = sbr.rel (%p146) target = $region24
      $region23: #{tpu_custom_call.1} parent=5 // pred_region
        // Predicated region
        $region25: #{tpu_custom_call.1} parent=23 // pred_check
          %p149 = pneg %p34
        $region26: #{tpu_custom_call.1} parent=23 // pred_check_branch
          %151 = sbr.rel (%p149) target = $region28
        $region27: #{tpu_custom_call.1} parent=23 // pred_region
          %s152 = sand.u32 %s24, 1
          %s153 = scalar_lea.sflag [#allocation3], %s152
          %s154 = sand.u32 %s24, 1
          %s155 = smul.addr %s154, 48
          %s156 = scalar_lea.vmem [#allocation2], %s155
          %s158 = ssub.s32 768, 768
          %159 = vsyncadd %s153, %s158
          %s160 = smul.addr %s14, 6
          %s161 = smul.addr %s160, 128
          %s162 = scalar_lea.hbm %s0, %s161
          %s163 = sshll.u32 %s156, 4
          %s164 = int_to_ptr.vmem [resolvable:$true] %s163
          %169 = dma.hbm_to_vmem [thread:$0]  %s162, 768, %s164, %s153, 128, 128, 8
        $region28: #{tpu_custom_call.1} parent=23 // pred_fallthru
          _
      $region24: #{tpu_custom_call.1} parent=5 // pred_fallthru
        _
      %p170 = scmp.le.s32.totalorder 1, %s14
      %p171 = scmp.lt.s32.totalorder %s14, 3
      %p172 = pnand %p170, %p171
      %p173 = pneg %p172
      // Predicated region
      $region29: #{tpu_custom_call.1} parent=5 // pred_check
        _
      $region30: #{tpu_custom_call.1} parent=5 // pred_check_branch
        %175 = sbr.rel (%p172) target = $region32
      $region31: #{tpu_custom_call.1} parent=5 // pred_region
        %s176 = ssub.s32 %s14, 1
        %s177 = sand.u32 %s27, 1
        %s178 = scalar_lea.sflag [#allocation3], %s177
        %s179 = sand.u32 %s27, 1
        %s180 = smul.addr %s179, 48
        %s181 = scalar_lea.vmem [#allocation2], %s180
        // Predicated region
        $region33: #{tpu_custom_call.1} parent=31 // pred_check
          %p182 = pneg %p40
        $region34: #{tpu_custom_call.1} parent=31 // pred_check_branch
          %184 = sbr.rel (%p182) target = $region36
        $region35: #{tpu_custom_call.1} parent=31 // pred_region
          %185 = dma.done %s178, 768
        $region36: #{tpu_custom_call.1} parent=31 // pred_fallthru
          _
        // Predicated region
        $region37: #{tpu_custom_call.1} parent=31 // pred_check
          %p186 = pneg %p61
        $region38: #{tpu_custom_call.1} parent=31 // pred_check_branch
          %188 = sbr.rel (%p186) target = $region40
        $region39: #{tpu_custom_call.1} parent=31 // pred_region
          %189 = dma.done [#allocation4], 128
        $region40: #{tpu_custom_call.1} parent=31 // pred_fallthru
          _
        // Predicated region
        $region41: #{tpu_custom_call.1} parent=31 // pred_check
          %p190 = pneg %p82
        $region42: #{tpu_custom_call.1} parent=31 // pred_check_branch
          %192 = sbr.rel (%p190) target = $region44
        $region43: #{tpu_custom_call.1} parent=31 // pred_region
          %193 = dma.done [#allocation7], 16
        $region44: #{tpu_custom_call.1} parent=31 // pred_fallthru
          _
        %194 = sfence
        %s195 = sand.u32 %s27, 1
        %s196 = scalar_lea.sflag [#allocation3], %s195
        %s197 = sand.u32 %s27, 1
        %s198 = smul.addr %s197, 48
        %s199 = scalar_lea.vmem [#allocation2], %s198
        %p200 = pneg %p40
        %p201 = pneg %p37
        %p202 = pneg %p61
        %p203 = pneg %p58
        %p204 = pneg %p82
        %p205 = pneg %p79
        %p206 = pneg %p108
        %p207 = pneg %p105
        %p208 = scmp.lt.s32.totalorder %s19, 1
        %s209 = scalar_select %p208, %s19, 1
        %s210 = smul.addr %s209, 24
        %s211 = smul.addr %s210, 8
        %s212 = scalar_lea.vmem %s3, %s211
        %p213 = scmp.lt.s32.totalorder %s19, 1
        %s214 = scalar_select %p213, %s19, 1
        %s215 = smul.addr %s214, 24
        %s216 = smul.addr %s215, 8
        %s217 = scalar_lea.vmem %s3, %s216
        %v218 = vld [vmem:[%s181] sm:$0xff]
        %v219 = vld [vmem:[%s181 + $0x8] sm:$0xff]
        %v220 = vld [vmem:[%s181 + $0x10] sm:$0xff]
        %v221 = vld [vmem:[%s181 + $0x18] sm:$0xff]
        %v222 = vld [vmem:[%s181 + $0x20] sm:$0xff]
        %v223 = vld [vmem:[%s181 + $0x28] sm:$0xff]
        %s224 = sld [smem:[#allocation6]]
        %v225 = vstv %s224
        %s226 = sld [smem:[#allocation5]]
        %v227 = vstv %s226
        %v228 = vmul.f32 %v227, %v218
        %v229 = vmul.f32 %v227, %v219
        %v230 = vadd.f32 %v225, %v228
        %v231 = vadd.f32 %v225, %v229
        %s232 = sld [smem:[#allocation5 + $0x1]]
        %v233 = vstv %s232
        %v234 = vmul.f32 %v233, %v220
        %v235 = vmul.f32 %v233, %v221
        %v236 = vadd.f32 %v230, %v234
        %v237 = vadd.f32 %v231, %v235
        %s238 = sld [smem:[#allocation5 + $0x2]]
        %v239 = vstv %s238
        %v240 = vmul.f32 %v239, %v222
        %v241 = vmul.f32 %v239, %v223
        %v242 = vadd.f32 %v236, %v240
        %v243 = vadd.f32 %v237, %v241
        %vm246 = vcmask 1040384
        %v247 = vrot.slane %v242, 7
        %v248 = vrot.slane %v243, 7
        %v249 = vsel %vm246, %v247, %v248
        %v252 = vsel %vm246, %v225, %v247
        %v253 = vsel %vm246, %v248, %v225
        %256 = vrot.lane.b32.xlu0 %v252, 1
        %v257 = vpop.permute.xlu0 %256
        %258 = vrot.lane.b32.xlu0 %v249, 1
        %v259 = vpop.permute.xlu0 %258
        %260 = vrot.lane.b32.xlu0 %v253, 1
        %v261 = vpop.permute.xlu0 %260
        %vm265 = vcmask 7168
        %v266 = vsel %vm265, %v225, %v257
        %v267 = vsel %vm265, %v225, %v259
        %v268 = vsel %vm265, %v225, %v261
        %vm269 = vcmask 138240
        %v270 = vsel %vm269, %v266, %v225
        %v271 = vsel %vm269, %v267, %v225
        %v272 = vsel %vm269, %v268, %v225
        %s273 = sld [smem:[#allocation6 + $0x1]]
        %v274 = vstv %s273
        %s275 = sld [smem:[#allocation5 + $0x80]]
        %v276 = vstv %s275
        %v277 = vmul.f32 %v276, %v218
        %v278 = vmul.f32 %v276, %v219
        %v279 = vadd.f32 %v274, %v277
        %v280 = vadd.f32 %v274, %v278
        %s281 = sld [smem:[#allocation5 + $0x81]]
        %v282 = vstv %s281
        %v283 = vmul.f32 %v282, %v220
        %v284 = vmul.f32 %v282, %v221
        %v285 = vadd.f32 %v279, %v283
        %v286 = vadd.f32 %v280, %v284
        %s287 = sld [smem:[#allocation5 + $0x82]]
        %v288 = vstv %s287
        %v289 = vmul.f32 %v288, %v222
        %v290 = vmul.f32 %v288, %v223
        %v291 = vadd.f32 %v285, %v289
        %v292 = vadd.f32 %v286, %v290
        %v295 = vrot.slane %v291, 7
        %v296 = vrot.slane %v292, 7
        %v297 = vsel %vm246, %v295, %v296
        %v300 = vsel %vm246, %v274, %v295
        %v301 = vsel %vm246, %v296, %v274
        %304 = vrot.lane.b32.xlu0 %v300, 1
        %v305 = vpop.permute.xlu0 %304
        %306 = vrot.lane.b32.xlu0 %v297, 1
        %v307 = vpop.permute.xlu0 %306
        %308 = vrot.lane.b32.xlu0 %v301, 1
        %v309 = vpop.permute.xlu0 %308
        %v313 = vsel %vm265, %v274, %v305
        %v314 = vsel %vm265, %v274, %v307
        %v315 = vsel %vm265, %v274, %v309
        %v316 = vsel %vm269, %v313, %v274
        %v317 = vsel %vm269, %v314, %v274
        %v318 = vsel %vm269, %v315, %v274
        %s319 = sld [smem:[#allocation6 + $0x2]]
        %v320 = vstv %s319
        %s321 = sld [smem:[#allocation5 + $0x100]]
        %v322 = vstv %s321
        %v323 = vmul.f32 %v322, %v218
        %v324 = vmul.f32 %v322, %v219
        %v325 = vadd.f32 %v320, %v323
        %v326 = vadd.f32 %v320, %v324
        %s327 = sld [smem:[#allocation5 + $0x101]]
        %v328 = vstv %s327
        %v329 = vmul.f32 %v328, %v220
        %v330 = vmul.f32 %v328, %v221
        %v331 = vadd.f32 %v325, %v329
        %v332 = vadd.f32 %v326, %v330
        %s333 = sld [smem:[#allocation5 + $0x102]]
        %v334 = vstv %s333
        %v335 = vmul.f32 %v334, %v222
        %v336 = vmul.f32 %v334, %v223
        %v337 = vadd.f32 %v331, %v335
        %v338 = vadd.f32 %v332, %v336
        %v341 = vrot.slane %v337, 7
        %v342 = vrot.slane %v338, 7
        %v343 = vsel %vm246, %v341, %v342
        %v346 = vsel %vm246, %v320, %v341
        %v347 = vsel %vm246, %v342, %v320
        %350 = vrot.lane.b32.xlu0 %v346, 1
        %v351 = vpop.permute.xlu0 %350
        %352 = vrot.lane.b32.xlu0 %v343, 1
        %v353 = vpop.permute.xlu0 %352
        %354 = vrot.lane.b32.xlu0 %v347, 1
        %v355 = vpop.permute.xlu0 %354
        %v359 = vsel %vm265, %v320, %v351
        %v360 = vsel %vm265, %v320, %v353
        %v361 = vsel %vm265, %v320, %v355
        %v362 = vsel %vm269, %v359, %v320
        %v363 = vsel %vm269, %v360, %v320
        %v364 = vsel %vm269, %v361, %v320
        %s365 = sld [smem:[#allocation6 + $0x3]]
        %v366 = vstv %s365
        %s367 = sld [smem:[#allocation5 + $0x180]]
        %v368 = vstv %s367
        %v369 = vmul.f32 %v368, %v218
        %v370 = vmul.f32 %v368, %v219
        %v371 = vadd.f32 %v366, %v369
        %v372 = vadd.f32 %v366, %v370
        %s373 = sld [smem:[#allocation5 + $0x181]]
        %v374 = vstv %s373
        %v375 = vmul.f32 %v374, %v220
        %v376 = vmul.f32 %v374, %v221
        %v377 = vadd.f32 %v371, %v375
        %v378 = vadd.f32 %v372, %v376
        %s379 = sld [smem:[#allocation5 + $0x182]]
        %v380 = vstv %s379
        %v381 = vmul.f32 %v380, %v222
        %v382 = vmul.f32 %v380, %v223
        %v383 = vadd.f32 %v377, %v381
        %v384 = vadd.f32 %v378, %v382
        %v387 = vrot.slane %v383, 7
        %v388 = vrot.slane %v384, 7
        %v389 = vsel %vm246, %v387, %v388
        %v392 = vsel %vm246, %v366, %v387
        %v393 = vsel %vm246, %v388, %v366
        %396 = vrot.lane.b32.xlu0 %v392, 1
        %v397 = vpop.permute.xlu0 %396
        %398 = vrot.lane.b32.xlu0 %v389, 1
        %v399 = vpop.permute.xlu0 %398
        %400 = vrot.lane.b32.xlu0 %v393, 1
        %v401 = vpop.permute.xlu0 %400
        %v405 = vsel %vm265, %v366, %v397
        %v406 = vsel %vm265, %v366, %v399
        %v407 = vsel %vm265, %v366, %v401
        %v408 = vsel %vm269, %v405, %v366
        %v409 = vsel %vm269, %v406, %v366
        %v410 = vsel %vm269, %v407, %v366
        %s411 = sld [smem:[#allocation6 + $0x4]]
        %v412 = vstv %s411
        %s413 = sld [smem:[#allocation5 + $0x200]]
        %v414 = vstv %s413
        %v415 = vmul.f32 %v414, %v218
        %v416 = vmul.f32 %v414, %v219
        %v417 = vadd.f32 %v412, %v415
        %v418 = vadd.f32 %v412, %v416
        %s419 = sld [smem:[#allocation5 + $0x201]]
        %v420 = vstv %s419
        %v421 = vmul.f32 %v420, %v220
        %v422 = vmul.f32 %v420, %v221
        %v423 = vadd.f32 %v417, %v421
        %v424 = vadd.f32 %v418, %v422
        %s425 = sld [smem:[#allocation5 + $0x202]]
        %v426 = vstv %s425
        %v427 = vmul.f32 %v426, %v222
        %v428 = vmul.f32 %v426, %v223
        %v429 = vadd.f32 %v423, %v427
        %v430 = vadd.f32 %v424, %v428
        %v433 = vrot.slane %v429, 7
        %v434 = vrot.slane %v430, 7
        %v435 = vsel %vm246, %v433, %v434
        %v438 = vsel %vm246, %v412, %v433
        %v439 = vsel %vm246, %v434, %v412
        %442 = vrot.lane.b32.xlu0 %v438, 1
        %v443 = vpop.permute.xlu0 %442
        %444 = vrot.lane.b32.xlu0 %v435, 1
        %v445 = vpop.permute.xlu0 %444
        %446 = vrot.lane.b32.xlu0 %v439, 1
        %v447 = vpop.permute.xlu0 %446
        %v451 = vsel %vm265, %v412, %v443
        %v452 = vsel %vm265, %v412, %v445
        %v453 = vsel %vm265, %v412, %v447
        %v454 = vsel %vm269, %v451, %v412
        %v455 = vsel %vm269, %v452, %v412
        %v456 = vsel %vm269, %v453, %v412
        %s457 = sld [smem:[#allocation6 + $0x5]]
        %v458 = vstv %s457
        %s459 = sld [smem:[#allocation5 + $0x280]]
        %v460 = vstv %s459
        %v461 = vmul.f32 %v460, %v218
        %v462 = vmul.f32 %v460, %v219
        %v463 = vadd.f32 %v458, %v461
        %v464 = vadd.f32 %v458, %v462
        %s465 = sld [smem:[#allocation5 + $0x281]]
        %v466 = vstv %s465
        %v467 = vmul.f32 %v466, %v220
        %v468 = vmul.f32 %v466, %v221
        %v469 = vadd.f32 %v463, %v467
        %v470 = vadd.f32 %v464, %v468
        %s471 = sld [smem:[#allocation5 + $0x282]]
        %v472 = vstv %s471
        %v473 = vmul.f32 %v472, %v222
        %v474 = vmul.f32 %v472, %v223
        %v475 = vadd.f32 %v469, %v473
        %v476 = vadd.f32 %v470, %v474
        %v479 = vrot.slane %v475, 7
        %v480 = vrot.slane %v476, 7
        %v481 = vsel %vm246, %v479, %v480
        %v484 = vsel %vm246, %v458, %v479
        %v485 = vsel %vm246, %v480, %v458
        %488 = vrot.lane.b32.xlu0 %v484, 1
        %v489 = vpop.permute.xlu0 %488
        %490 = vrot.lane.b32.xlu0 %v481, 1
        %v491 = vpop.permute.xlu0 %490
        %492 = vrot.lane.b32.xlu0 %v485, 1
        %v493 = vpop.permute.xlu0 %492
        %v497 = vsel %vm265, %v458, %v489
        %v498 = vsel %vm265, %v458, %v491
        %v499 = vsel %vm265, %v458, %v493
        %v500 = vsel %vm269, %v497, %v458
        %v501 = vsel %vm269, %v498, %v458
        %v502 = vsel %vm269, %v499, %v458
        %s503 = sld [smem:[#allocation6 + $0x6]]
        %v504 = vstv %s503
        %s505 = sld [smem:[#allocation5 + $0x300]]
        %v506 = vstv %s505
        %v507 = vmul.f32 %v506, %v218
        %v508 = vmul.f32 %v506, %v219
        %v509 = vadd.f32 %v504, %v507
        %v510 = vadd.f32 %v504, %v508
        %s511 = sld [smem:[#allocation5 + $0x301]]
        %v512 = vstv %s511
        %v513 = vmul.f32 %v512, %v220
        %v514 = vmul.f32 %v512, %v221
        %v515 = vadd.f32 %v509, %v513
        %v516 = vadd.f32 %v510, %v514
        %s517 = sld [smem:[#allocation5 + $0x302]]
        %v518 = vstv %s517
        %v519 = vmul.f32 %v518, %v222
        %v520 = vmul.f32 %v518, %v223
        %v521 = vadd.f32 %v515, %v519
        %v522 = vadd.f32 %v516, %v520
        %v525 = vrot.slane %v521, 7
        %v526 = vrot.slane %v522, 7
        %v527 = vsel %vm246, %v525, %v526
        %v530 = vsel %vm246, %v504, %v525
        %v531 = vsel %vm246, %v526, %v504
        %534 = vrot.lane.b32.xlu0 %v530, 1
        %v535 = vpop.permute.xlu0 %534
        %536 = vrot.lane.b32.xlu0 %v527, 1
        %v537 = vpop.permute.xlu0 %536
        %538 = vrot.lane.b32.xlu0 %v531, 1
        %v539 = vpop.permute.xlu0 %538
        %v543 = vsel %vm265, %v504, %v535
        %v544 = vsel %vm265, %v504, %v537
        %v545 = vsel %vm265, %v504, %v539
        %v546 = vsel %vm269, %v543, %v504
        %v547 = vsel %vm269, %v544, %v504
        %v548 = vsel %vm269, %v545, %v504
        %s549 = sld [smem:[#allocation6 + $0x7]]
        %v550 = vstv %s549
        %s551 = sld [smem:[#allocation5 + $0x380]]
        %v552 = vstv %s551
        %v553 = vmul.f32 %v552, %v218
        %v554 = vmul.f32 %v552, %v219
        %v555 = vadd.f32 %v550, %v553
        %v556 = vadd.f32 %v550, %v554
        %s557 = sld [smem:[#allocation5 + $0x381]]
        %v558 = vstv %s557
        %v559 = vmul.f32 %v558, %v220
        %v560 = vmul.f32 %v558, %v221
        %v561 = vadd.f32 %v555, %v559
        %v562 = vadd.f32 %v556, %v560
        %s563 = sld [smem:[#allocation5 + $0x382]]
        %v564 = vstv %s563
        %v565 = vmul.f32 %v564, %v222
        %v566 = vmul.f32 %v564, %v223
        %v567 = vadd.f32 %v561, %v565
        %v568 = vadd.f32 %v562, %v566
        %v571 = vrot.slane %v567, 7
        %v572 = vrot.slane %v568, 7
        %v573 = vsel %vm246, %v571, %v572
        %v576 = vsel %vm246, %v550, %v571
        %v577 = vsel %vm246, %v572, %v550
        %580 = vrot.lane.b32.xlu0 %v576, 1
        %v581 = vpop.permute.xlu0 %580
        %582 = vrot.lane.b32.xlu0 %v573, 1
        %v583 = vpop.permute.xlu0 %582
        %584 = vrot.lane.b32.xlu0 %v577, 1
        %v585 = vpop.permute.xlu0 %584
        %v589 = vsel %vm265, %v550, %v581
        %v590 = vsel %vm265, %v550, %v583
        %v591 = vsel %vm265, %v550, %v585
        %v592 = vsel %vm269, %v589, %v550
        %v593 = vsel %vm269, %v590, %v550
        %v594 = vsel %vm269, %v591, %v550
        %vm595 = vcmask 146432
        %596 = vst.msk [vmem:[%s217] sm:$0xff] %vm595, %v270
        %597 = vst.msk [vmem:[%s217 + $0x8] sm:$0xff] %vm595, %v271
        %vm598 = vcmask 140288
        %599 = vst.msk [vmem:[%s217 + $0x10] sm:$0x3] %vm598, %v272
        %600 = vst.msk [vmem:[%s217 + $0x18] sm:$0xff] %vm595, %v316
        %601 = vst.msk [vmem:[%s217 + $0x20] sm:$0xff] %vm595, %v317
        %602 = vst.msk [vmem:[%s217 + $0x28] sm:$0x3] %vm598, %v318
        %603 = vst.msk [vmem:[%s217 + $0x30] sm:$0xff] %vm595, %v362
        %604 = vst.msk [vmem:[%s217 + $0x38] sm:$0xff] %vm595, %v363
        %605 = vst.msk [vmem:[%s217 + $0x40] sm:$0x3] %vm598, %v364
        %606 = vst.msk [vmem:[%s217 + $0x48] sm:$0xff] %vm595, %v408
        %607 = vst.msk [vmem:[%s217 + $0x50] sm:$0xff] %vm595, %v409
        %608 = vst.msk [vmem:[%s217 + $0x58] sm:$0x3] %vm598, %v410
        %609 = vst.msk [vmem:[%s217 + $0x60] sm:$0xff] %vm595, %v454
        %610 = vst.msk [vmem:[%s217 + $0x68] sm:$0xff] %vm595, %v455
        %611 = vst.msk [vmem:[%s217 + $0x70] sm:$0x3] %vm598, %v456
        %612 = vst.msk [vmem:[%s217 + $0x78] sm:$0xff] %vm595, %v500
        %613 = vst.msk [vmem:[%s217 + $0x80] sm:$0xff] %vm595, %v501
        %614 = vst.msk [vmem:[%s217 + $0x88] sm:$0x3] %vm598, %v502
        %615 = vst.msk [vmem:[%s217 + $0x90] sm:$0xff] %vm595, %v546
        %616 = vst.msk [vmem:[%s217 + $0x98] sm:$0xff] %vm595, %v547
        %617 = vst.msk [vmem:[%s217 + $0xa0] sm:$0x3] %vm598, %v548
        %618 = vst.msk [vmem:[%s217 + $0xa8] sm:$0xff] %vm595, %v592
        %619 = vst.msk [vmem:[%s217 + $0xb0] sm:$0xff] %vm595, %v593
        %620 = vst.msk [vmem:[%s217 + $0xb8] sm:$0x3] %vm598, %v594
        %p621 = scmp.lt.s32.totalorder %s19, 1
        %s622 = scalar_select %p621, %s19, 1
        %s623 = smul.addr %s622, 24
        %s624 = smul.addr %s623, 8
        %s625 = scalar_lea.vmem %s3, %s624
        // Predicated region
        $region45: #{tpu_custom_call.1} parent=31 // pred_check
          %p626 = pneg %p105
        $region46: #{tpu_custom_call.1} parent=31 // pred_check_branch
          %628 = sbr.rel (%p626) target = $region48
        $region47: #{tpu_custom_call.1} parent=31 // pred_region
          _
        $region48: #{tpu_custom_call.1} parent=31 // pred_fallthru
          _
      $region32: #{tpu_custom_call.1} parent=5 // pred_fallthru
        _
      %p629 = scmp.le.s32.totalorder 2, %s14
      // Predicated region
      $region49: #{tpu_custom_call.1} parent=5 // pred_check
        %p630 = pneg %p629
      $region50: #{tpu_custom_call.1} parent=5 // pred_check_branch
        %632 = sbr.rel (%p630) target = $region52
      $region51: #{tpu_custom_call.1} parent=5 // pred_region
        %s633 = ssub.s32 %s14, 2
        // Predicated region
        $region53: #{tpu_custom_call.1} parent=51 // pred_check
          %p634 = pneg %p111
        $region54: #{tpu_custom_call.1} parent=51 // pred_check_branch
          %636 = sbr.rel (%p634) target = $region56
        $region55: #{tpu_custom_call.1} parent=51 // pred_region
          %p637 = scmp.lt.s32.totalorder %s20, 1
          %s638 = scalar_select %p637, %s20, 1
          %s639 = smul.addr %s638, 24
          %s640 = smul.addr %s639, 8
          %s641 = scalar_lea.vmem %s3, %s640
        $region56: #{tpu_custom_call.1} parent=51 // pred_fallthru
          _
      $region52: #{tpu_custom_call.1} parent=5 // pred_fallthru
        _
    $region6: #{tpu_custom_call.1} parent=1 // loop_footer
      %s18 = sadd.s32 1, %s14
    $region7: #{tpu_custom_call.1} parent=1 // loop_footer_branch
      %13 = sbr.rel target = $region3
    $region8: #{tpu_custom_call.1} parent=1 // loop_exit
      _
    %642 = vsyncpa [#allocation3], 1
    %s643 = scalar_lea.sflag [#allocation3], 1
    %644 = vsyncpa %s643, 1
    %645 = vsyncpa [#allocation4], 1
    %s646 = scalar_lea.sflag [#allocation4], 1
    %647 = vsyncpa %s646, 1
    %648 = vsyncpa [#allocation7], 1

</llo_original>
